<compile_context>
chip_gen: v6e
topology: v6e:2x2x1
jax: 0.10.0
libtpu: 0.0.40
codegen_flags: <defaults>
</compile_context>

<pallas_src>
import jax
import jax.numpy as jnp
from jax.experimental import pallas as pl
from jax.experimental.pallas import tpu as pltpu


# ---------------------------------------------------------------------------
# Kernel: fused  (gamma0*x + beta0) -> LeakyReLU -> (gamma1*. + beta1) -> LeakyReLU
# ---------------------------------------------------------------------------
def dfblk_kernel(x_ref, coef_ref, out_ref):
    # x_ref   : (TR, HWp)  feature rows (one row = one (b, c) pair, spatial on lanes)
    # coef_ref: (TR, 4)    per-row [gamma0, beta0, gamma1, beta1]
    # out_ref : (TR, HWp)
    x = x_ref[...].astype(jnp.float32)
    c = coef_ref[...].astype(jnp.float32)

    g0 = c[:, 0:1]
    b0 = c[:, 1:2]
    g1 = c[:, 2:3]
    b1 = c[:, 3:4]

    h = g0 * x + b0                      # Affine0 (per-row scale/shift, lane broadcast)
    h = jnp.maximum(h, 0.2 * h)          # LeakyReLU(0.2)
    h = g1 * h + b1                      # Affine1
    h = jnp.maximum(h, 0.2 * h)          # LeakyReLU(0.2)

    out_ref[...] = h.astype(out_ref.dtype)


# ---------------------------------------------------------------------------
# Wrapper
# ---------------------------------------------------------------------------
def _round_up(n, m):
    return ((n + m - 1) // m) * m


def _row_tile(num_rows, hw_pad, itemsize, target_bytes=4 << 20):
    """Row tile: ~target_bytes per block, multiple of 16 sublanes (covers f32 and
    bf16 tiling), never larger than the (padded) row count."""
    bytes_per_row = max(1, hw_pad * itemsize)
    tr = max(16, (target_bytes // bytes_per_row) // 16 * 16)
    tr = min(tr, _round_up(num_rows, 16))
    return tr


def _cond_coefs(y, w1s, b1s, w2s, b2s):
    """Tiny conditioning MLPs (hoisted to XLA): y (B, CD) -> (B, 4, C) with head
    order [gamma0, beta0, gamma1, beta1].  PyTorch nn.Linear semantics (x @ W.T + b);
    per the spec module the hidden width equals num_features == C."""
    y = y.astype(jnp.float32)
    z = jnp.einsum('bd,hcd->bhc', y, w1s.astype(jnp.float32)) + b1s[None].astype(jnp.float32)
    z = jnp.maximum(z, 0.0)
    g = jnp.einsum('bhc,hoc->bho', z, w2s.astype(jnp.float32)) + b2s[None].astype(jnp.float32)
    return g  # (B, 4, C)


def dfblk_forward(x, y, w1s, b1s, w2s, b2s, *, target_bytes=4 << 20):
    """x: (B, C, H, W) NCHW; y: (B, cond_dim).
    Weights along axis 0 ordered [affine0.gamma, affine0.beta, affine1.gamma, affine1.beta]:
      w1s: (4, C, cond_dim), b1s: (4, C), w2s: (4, C, C), b2s: (4, C)."""
    B, C, H, W = x.shape
    HW = H * W
    R = B * C

    # --- layout: fold channels onto sublanes, spatial onto lanes -------------
    hw_pad = _round_up(HW, 128)                       # lane-dense stores
    tr = _row_tile(R, hw_pad, x.dtype.itemsize, target_bytes)
    r_pad = _round_up(R, tr)

    x2 = x.reshape(R, HW)
    if hw_pad != HW:
        x2 = jnp.pad(x2, ((0, 0), (0, hw_pad - HW)))
    if r_pad != R:
        x2 = jnp.pad(x2, ((0, r_pad - R), (0, 0)))

    # --- per-row affine coefficients (computed ONCE, outside the kernel) -----
    coefs = _cond_coefs(y, w1s, b1s, w2s, b2s)        # (B, 4, C)
    coefs = jnp.transpose(coefs, (0, 2, 1)).reshape(R, 4)   # row (b*C + c) -> its 4 coefs
    if r_pad != R:
        coefs = jnp.pad(coefs, ((0, r_pad - R), (0, 0)))    # padded rows: 0*x+0 -> 0, safe

    grid = (r_pad // tr,)

    out = pl.pallas_call(
        dfblk_kernel,
        out_shape=jax.ShapeDtypeStruct((r_pad, hw_pad), x.dtype),
        grid_spec=pltpu.PrefetchScalarGridSpec(
            num_scalar_prefetch=0,
            grid=grid,
            in_specs=[
                pl.BlockSpec((tr, hw_pad), lambda r: (r, 0)),   # x rows (batch*channel tiled)
                pl.BlockSpec((tr, 4), lambda r: (r, 0)),        # per-row coefficients (tiny)
            ],
            out_specs=pl.BlockSpec((tr, hw_pad), lambda r: (r, 0)),
        ),
        compiler_params=pltpu.CompilerParams(
            dimension_semantics=("parallel",),        # rows independent -> megacore on v7x
            vmem_limit_bytes=32 << 20,                # 2 arrays x 2 bufs x 4 MiB = 16 MiB << 32 MiB
        ),
    )(x2, coefs)

    return out[:R, :HW].reshape(B, C, H, W)


# ---------------------------------------------------------------------------
# Pure-JAX reference (matches the PyTorch module)
# ---------------------------------------------------------------------------
def dfblk_ref(x, y, w1s, b1s, w2s, b2s):
    def mlp(k):
        z = jnp.maximum(y @ w1s[k].T + b1s[k], 0.0)
        return z @ w2s[k].T + b2s[k]

    def affine(xx, kg, kb):
        gamma = mlp(kg)[:, :, None, None]
        beta = mlp(kb)[:, :, None, None]
        return gamma * xx + beta

    h = affine(x, 0, 1)
    h = jnp.where(h > 0, h, 0.2 * h)
    h = affine(h, 2, 3)
    h = jnp.where(h > 0, h, 0.2 * h)
    return h


if __name__ == "__main__":
    # Small shapes consistent with the module: batch=2, in_ch=4, spatial=16x16, cond_dim=32.
    B, C, H, W, cond_dim = 2, 4, 16, 16, 32

    key = jax.random.PRNGKey(0)
    k = jax.random.split(key, 6)
    x = jax.random.normal(k[0], (B, C, H, W), dtype=jnp.float32)
    y = jax.random.normal(k[1], (B, cond_dim), dtype=jnp.float32)
    # Random (non-degenerate) parameters so the conditioning MLP path is exercised.
    # Head order along axis 0: [affine0.gamma, affine0.beta, affine1.gamma, affine1.beta].
    w1s = jax.random.normal(k[2], (4, C, cond_dim), dtype=jnp.float32) * 0.1
    b1s = jax.random.normal(k[3], (4, C), dtype=jnp.float32) * 0.1
    w2s = jax.random.normal(k[4], (4, C, C), dtype=jnp.float32) * 0.1
    b2s = jax.random.normal(k[5], (4, C), dtype=jnp.float32) * 0.1

    out = dfblk_forward(x, y, w1s, b1s, w2s, b2s)
    jax.block_until_ready(out)

    ref = dfblk_ref(x, y, w1s, b1s, w2s, b2s)
    assert out.shape == (B, C, H, W), out.shape
    assert jnp.allclose(out, ref, rtol=1e-4, atol=1e-4), (out, ref)
    print("KERNEL_OK")
</pallas_src>

<mosaic_0001>
module attributes {stable_mosaic.version = 11 : i64} {
  func.func @dfblk_kernel(%arg0: i32, %arg1: memref<16x256xf32, #tpu.memory_space<vmem>>, %arg2: memref<16x4xf32, #tpu.memory_space<vmem>>, %arg3: memref<16x256xf32, #tpu.memory_space<vmem>>) attributes {dimension_semantics = [#tpu.dimension_semantics<parallel>], iteration_bounds = array<i64: 1>, scalar_prefetch = 0 : i64, scratch_operands = 0 : i64, tpu.core_type = #tpu.core_type<tc>, window_params = [{transform_indices = @transform_0, window_bounds = array<i64: 16, 256>}, {transform_indices = @transform_1, window_bounds = array<i64: 16, 4>}, {transform_indices = @transform_2, window_bounds = array<i64: 16, 256>}]} {
    %c0 = arith.constant 0 : index
    %c0_0 = arith.constant 0 : index
    %0 = vector.load %arg1[%c0, %c0_0] : memref<16x256xf32, #tpu.memory_space<vmem>>, vector<16x256xf32>
    %c0_1 = arith.constant 0 : index
    %c0_2 = arith.constant 0 : index
    %1 = vector.load %arg2[%c0_1, %c0_2] : memref<16x4xf32, #tpu.memory_space<vmem>>, vector<16x4xf32>
    %2 = vector.extract_strided_slice %1 {offsets = [0, 0], sizes = [16, 1], strides = [1, 1]} : vector<16x4xf32> to vector<16x1xf32>
    %3 = vector.extract_strided_slice %1 {offsets = [0, 1], sizes = [16, 1], strides = [1, 1]} : vector<16x4xf32> to vector<16x1xf32>
    %4 = vector.extract_strided_slice %1 {offsets = [0, 2], sizes = [16, 1], strides = [1, 1]} : vector<16x4xf32> to vector<16x1xf32>
    %5 = vector.extract_strided_slice %1 {offsets = [0, 3], sizes = [16, 1], strides = [1, 1]} : vector<16x4xf32> to vector<16x1xf32>
    %6 = vector.broadcast %2 : vector<16x1xf32> to vector<16x256xf32>
    %7 = arith.mulf %6, %0 : vector<16x256xf32>
    %8 = vector.broadcast %3 : vector<16x1xf32> to vector<16x256xf32>
    %9 = arith.addf %7, %8 : vector<16x256xf32>
    %cst = arith.constant 2.000000e-01 : f32
    %10 = vector.broadcast %cst : f32 to vector<16x256xf32>
    %11 = arith.mulf %10, %9 : vector<16x256xf32>
    %12 = arith.maximumf %9, %11 : vector<16x256xf32>
    %13 = vector.broadcast %4 : vector<16x1xf32> to vector<16x256xf32>
    %14 = arith.mulf %13, %12 : vector<16x256xf32>
    %15 = vector.broadcast %5 : vector<16x1xf32> to vector<16x256xf32>
    %16 = arith.addf %14, %15 : vector<16x256xf32>
    %cst_3 = arith.constant 2.000000e-01 : f32
    %17 = vector.broadcast %cst_3 : f32 to vector<16x256xf32>
    %18 = arith.mulf %17, %16 : vector<16x256xf32>
    %19 = arith.maximumf %16, %18 : vector<16x256xf32>
    %c0_4 = arith.constant 0 : index
    %c0_5 = arith.constant 0 : index
    %20 = vector.load %arg3[%c0_4, %c0_5] : memref<16x256xf32, #tpu.memory_space<vmem>>, vector<16x256xf32>
    tpu.vector_store %arg3[%c0_4, %c0_5], %19 {strides = array<i32>} : memref<16x256xf32, #tpu.memory_space<vmem>>, vector<16x256xf32>,
    return
  }
  func.func @transform_0(%arg0: i32) -> (i32, i32) {
    %c0_i32 = arith.constant 0 : i32
    %c0_i32_0 = arith.constant 0 : i32
    return %arg0, %c0_i32 : i32, i32
  }
  func.func @transform_1(%arg0: i32) -> (i32, i32) {
    %c0_i32 = arith.constant 0 : i32
    %c0_i32_0 = arith.constant 0 : i32
    return %arg0, %c0_i32 : i32, i32
  }
  func.func @transform_2(%arg0: i32) -> (i32, i32) {
    %c0_i32 = arith.constant 0 : i32
    %c0_i32_0 = arith.constant 0 : i32
    return %arg0, %c0_i32 : i32, i32
  }
}

</mosaic_0001>

<llo_original>
// kernel: tpu_custom_call.1
$region0: #{tpu_custom_call.1}
  #allocation0 [shape = 'u32[]', space=smem, size = 0x4, offset = 0x4, fixed_abs, tag = 'smem constant byte address 0x4 - core index']
  #allocation1 [shape = 'u32[144,128]{1,0:T(1,128)}', space=vmem, size = 0x12000, scoped, tag = 'internal scratch']
  %s0 = inlined_call_operand.hbm [shape: f32[16,256], index: 0, kind: input, shape index: {}]
  %s1 = inlined_call_operand.vmem [shape: f32[16,4], index: 1, kind: input, shape index: {}]
  %s2 = inlined_call_operand.hbm [shape: f32[16,256], index: 2, kind: output, shape index: {}]
  %s3 = sld [smem:[#allocation0]]
  $region22: #{tpu_custom_call.1} parent=0
    _
  %s5 = ssub.s32 1, %s3
  %s6 = scalar_select 0, %s5, %s3
  $region1: #{tpu_custom_call.1} parent=0
    #allocation2 [shape = 'u8[16384]{0}', space=vmem, size = 0x4000, scoped, tag = 'input window, operand 0, single buffered']
    #allocation3 [shape = 's32[1]{0}', space=sflag, size = 0x4, scoped, tag = 'scoped memory for tpu_custom_call.1']
    #allocation4 [shape = 's32[1]{0}', space=sflag, size = 0x4, scoped, tag = 'scoped memory for tpu_custom_call.1']
    #allocation5 [shape = 'u8[16384]{0}', space=vmem, size = 0x4000, scoped, tag = 'output window, operand 0, single buffered']
    %7 = vsyncpa [#allocation3], 0
    %8 = vsyncpa [#allocation4], 0
    // Predicated region
    $region2: #{tpu_custom_call.1} parent=1 // pred_check
      _
    $region3: #{tpu_custom_call.1} parent=1 // pred_check_branch
      %10 = sbr.rel (0) target = $region5
    $region4: #{tpu_custom_call.1} parent=1 // pred_region
      %s12 = ssub.s32 512, 512
      %13 = vsyncadd [#allocation3], %s12
      %s14 = sshll.u32 [#allocation2], 4
      %s15 = int_to_ptr.vmem [resolvable:$true] %s14
      %20 = dma.hbm_to_vmem [thread:$0]  %s0, 512, %s15, [#allocation3], 256, 256, 16
    $region5: #{tpu_custom_call.1} parent=1 // pred_fallthru
      _
    // Predicated region
    $region6: #{tpu_custom_call.1} parent=1 // pred_check
      _
    $region7: #{tpu_custom_call.1} parent=1 // pred_check_branch
      %22 = sbr.rel (0) target = $region9
    $region8: #{tpu_custom_call.1} parent=1 // pred_region
      _
    $region9: #{tpu_custom_call.1} parent=1 // pred_fallthru
      _
    // Predicated region
    $region10: #{tpu_custom_call.1} parent=1 // pred_check
      _
    $region11: #{tpu_custom_call.1} parent=1 // pred_check_branch
      %24 = sbr.rel (0) target = $region13
    $region12: #{tpu_custom_call.1} parent=1 // pred_region
      %25 = dma.done [#allocation3], 512
    $region13: #{tpu_custom_call.1} parent=1 // pred_fallthru
      _
    %v26 = vld [vmem:[#allocation2] sm:$0xff]
    %v27 = vld [vmem:[#allocation2 + $0x8] sm:$0xff]
    %v28 = vld [vmem:[#allocation2 + $0x10] sm:$0xff]
    %v29 = vld [vmem:[#allocation2 + $0x18] sm:$0xff]
    %v30 = vld [vmem:[%s1] sm:$0xff]
    %v31 = vld [vmem:[%s1 + $0x8] sm:$0xff]
    %33 = vset.pattern.permute.xlu0 0
    %34 = vperm.xlu0 %33, %v30
    %v35 = vpop.permute.xlu0 %34
    %38 = vset.pattern.permute.xlu0 0
    %39 = vperm.xlu0 %38, %v31
    %v40 = vpop.permute.xlu0 %39
    %v42 = vmul.f32 %v35, %v26
    %v43 = vmul.f32 %v35, %v27
    %v44 = vmul.f32 %v40, %v28
    %v45 = vmul.f32 %v40, %v29
    %46 = vset.pattern.permute.xlu0 1
    %47 = vperm.xlu0 %46, %v30
    %v48 = vpop.permute.xlu0 %47
    %50 = vset.pattern.permute.xlu0 1
    %51 = vperm.xlu0 %50, %v31
    %v52 = vpop.permute.xlu0 %51
    %v54 = vadd.f32 %v42, %v48
    %v55 = vadd.f32 %v43, %v48
    %v56 = vadd.f32 %v44, %v52
    %v57 = vadd.f32 %v45, %v52
    %v58 = vmul.f32 %v54, 0.2
    %v59 = vmul.f32 %v55, 0.2
    %v60 = vmul.f32 %v56, 0.2
    %v61 = vmul.f32 %v57, 0.2
    %v62 = vmax.f32 %v54, %v58
    %v63 = vmax.f32 %v55, %v59
    %v64 = vmax.f32 %v56, %v60
    %v65 = vmax.f32 %v57, %v61
    %66 = vset.pattern.permute.xlu0 2
    %67 = vperm.xlu0 %66, %v30
    %v68 = vpop.permute.xlu0 %67
    %70 = vset.pattern.permute.xlu0 2
    %71 = vperm.xlu0 %70, %v31
    %v72 = vpop.permute.xlu0 %71
    %v74 = vmul.f32 %v68, %v62
    %v75 = vmul.f32 %v68, %v63
    %v76 = vmul.f32 %v72, %v64
    %v77 = vmul.f32 %v72, %v65
    %78 = vset.pattern.permute.xlu0 3
    %79 = vperm.xlu0 %78, %v30
    %v80 = vpop.permute.xlu0 %79
    %82 = vset.pattern.permute.xlu0 3
    %83 = vperm.xlu0 %82, %v31
    %v84 = vpop.permute.xlu0 %83
    %v86 = vadd.f32 %v74, %v80
    %v87 = vadd.f32 %v75, %v80
    %v88 = vadd.f32 %v76, %v84
    %v89 = vadd.f32 %v77, %v84
    %v90 = vmul.f32 %v86, 0.2
    %v91 = vmul.f32 %v87, 0.2
    %v92 = vmul.f32 %v88, 0.2
    %v93 = vmul.f32 %v89, 0.2
    %v94 = vmax.f32 %v86, %v90
    %v95 = vmax.f32 %v87, %v91
    %v96 = vmax.f32 %v88, %v92
    %v97 = vmax.f32 %v89, %v93
    %98 = vst [vmem:[#allocation5] sm:$0xff] %v94
    %99 = vst [vmem:[#allocation5 + $0x8] sm:$0xff] %v95
    %100 = vst [vmem:[#allocation5 + $0x10] sm:$0xff] %v96
    %101 = vst [vmem:[#allocation5 + $0x18] sm:$0xff] %v97
    // Predicated region
    $region14: #{tpu_custom_call.1} parent=1 // pred_check
      _
    $region15: #{tpu_custom_call.1} parent=1 // pred_check_branch
      %103 = sbr.rel (0) target = $region17
    $region16: #{tpu_custom_call.1} parent=1 // pred_region
      %s105 = ssub.s32 512, 512
      %106 = vsyncadd [#allocation4], %s105
      %s107 = sshll.u32 [#allocation5], 4
      %s108 = int_to_ptr.vmem [resolvable:$true] %s107
      %113 = dma.vmem_to_hbm [thread:$0]  %s108, 512, %s2, [#allocation4], 256, 256, 16
    $region17: #{tpu_custom_call.1} parent=1 // pred_fallthru
      _
    // Predicated region
    $region18: #{tpu_custom_call.1} parent=1 // pred_check
      _
    $region19: #{tpu_custom_call.1} parent=1 // pred_check_branch
      %115 = sbr.rel (0) target = $region21
    $region20: #{tpu_custom_call.1} parent=1 // pred_region
      %116 = dma.done [#allocation4], 512
    $region21: #{tpu_custom_call.1} parent=1 // pred_fallthru
      _
    %117 = vsyncpa [#allocation3], 1
    %118 = vsyncpa [#allocation4], 1

</llo_original>
